<compile_context>
chip_gen: v6e
topology: v6e:2x2x1
jax: 0.10.0
libtpu: 0.0.40
codegen_flags: <defaults>
</compile_context>

<pallas_src>
import jax
import jax.numpy as jnp
from jax import lax
from jax.experimental import pallas as pl
from jax.experimental.pallas import tpu as pltpu

# ----------------------------- model hyper-params ---------------------------
HIDDEN_SIZE = 32          # bert_model.config.hidden_size
NUM_FILTERS = 8           # num_filters
FILTER_SIZES = (2, 3, 4)  # filter_sizes
NUM_CLASSES = 2           # output_size
BATCH = 2
SEQ_LEN = 8
VOCAB = 64

FS_MAX = max(FILTER_SIZES)                       # 4 taps in the fused conv weight
N_CONV = NUM_FILTERS * len(FILTER_SIZES)         # 24 real conv output columns
K_CONV = FS_MAX * HIDDEN_SIZE                    # 128 contraction depth (lane-dense)
N_PAD = 128                                      # conv output cols padded to 128 lanes
C_PAD = 128                                      # logits padded to 128 lanes
NEG_MASK = -1e30                                 # additive mask for invalid windows


# ------------------------------- Pallas kernel ------------------------------
def bert_textcnn_kernel(ids_ref, amask_ref, embed_ref, wconv_ref, biasmask_ref,
                        wfc_ref, bfc_ref, out_ref):
    r = ids_ref.shape[0]                  # rows in this batch tile = b_tile * S
    v, hdim = embed_ref.shape             # vocab, hidden
    s = biasmask_ref.shape[0]             # sequence length
    bt = r // s                           # sequences in this tile
    fs_max = wconv_ref.shape[0] // hdim   # taps in the fused conv weight

    # 1) BERT stub: embedding lookup as a one-hot MXU gather + attention mask.
    # TODO(synk): the real pretrained BERT encoder (self.bert_model) has no
    # in-script equivalent; it is stubbed by this embedding lookup.
    ids = ids_ref[...]                                              # [r, 1] int32
    vocab_iota = lax.broadcasted_iota(jnp.int32, (r, v), 1)
    one_hot = (vocab_iota == ids).astype(embed_ref.dtype)           # bf16 directly
    x = jnp.dot(one_hot, embed_ref[...], preferred_element_type=jnp.float32)
    x = x * amask_ref[...]                                          # [r, H] f32

    # 2) im2col: every tap is a full-length (r-row, sublane-aligned) slice of a
    #    zero-padded copy -- no odd-length L = S-fs+1 slices/reshapes.  Each slice
    #    is cast to bf16 before the lane-concat so the [r, 128] im2col buffer is
    #    half-width.  Windows that cross a sequence boundary are killed later by
    #    the additive -1e30 mask.
    pad_rows = ((fs_max - 1 + 7) // 8) * 8
    x_pad = jnp.concatenate([x, jnp.zeros((pad_rows, hdim), x.dtype)], axis=0)
    xs = jnp.concatenate(
        [x_pad[k:k + r, :].astype(wconv_ref.dtype) for k in range(fs_max)],
        axis=-1)                                                    # [r, fs_max*H] bf16

    # 3) every Conv1d (all taps, all filter sizes) in ONE MXU matmul (K=128,
    #    N=128 lane-dense).
    conv = jnp.dot(xs, wconv_ref[...], preferred_element_type=jnp.float32)  # [r, N_PAD]

    # 4) fused bias + validity mask + ReLU on the VPU (invalid windows get
    #    -1e30 -> ReLU clamps them to 0, which is max-neutral), then
    #    max-over-time pool.  Filter outputs sit side by side in the lane dim,
    #    so torch.cat(pooled, dim=1) is implicit.
    conv = jnp.maximum(conv.reshape(bt, s, conv.shape[-1]) + biasmask_ref[...], 0.0)
    pooled = jnp.max(conv, axis=1)                                  # [bt, N_PAD] f32

    # 5) dropout(p=0.2) is identity at inference; fused FC against the zero-padded
    #    [128, 128] weight -> lane-dense output store.
    logits = jnp.dot(pooled.astype(wfc_ref.dtype), wfc_ref[...],
                     preferred_element_type=jnp.float32) + bfc_ref[...]
    out_ref[...] = logits.astype(out_ref.dtype)


# ------------------------------ pallas wrapper -------------------------------
def bert_textcnn_forward(input_ids, attention_mask, packed_params):
    embed_bf16, w_all, bias_mask, fc_w_pad, fc_b_pad = packed_params
    B, S = input_ids.shape

    # Batch grid: each step handles b_tile sequences; the axis is independent so it
    # is marked "parallel" (megacore / v7x dual-TC sharding).  The batch is padded
    # up to a multiple of b_tile; padded rows are dropped after the call.  For real
    # BERT sizes (H=768, long S) keep 2 x b_tile*S*H*dtype + weights well under the
    # v7x 64 MiB VMEM (32 MiB default scoped) budget.
    b_tile = B if B <= 8 else 8
    b_pad = pl.cdiv(B, b_tile) * b_tile
    if b_pad != B:
        input_ids = jnp.pad(input_ids, ((0, b_pad - B), (0, 0)))
        attention_mask = jnp.pad(attention_mask, ((0, b_pad - B), (0, 0)))

    ids_col = input_ids.reshape(b_pad * S, 1).astype(jnp.int32)
    amask_col = attention_mask.reshape(b_pad * S, 1).astype(jnp.float32)

    grid = (b_pad // b_tile,)
    rows = b_tile * S

    logits_pad = pl.pallas_call(
        bert_textcnn_kernel,
        grid=grid,
        in_specs=[
            pl.BlockSpec((rows, 1), lambda i: (i, 0)),            # token ids
            pl.BlockSpec((rows, 1), lambda i: (i, 0)),            # attention mask
            pl.BlockSpec(embed_bf16.shape, lambda i: (0, 0)),     # embedding table
            pl.BlockSpec(w_all.shape, lambda i: (0, 0)),          # fused conv weight
            pl.BlockSpec(bias_mask.shape, lambda i: (0, 0)),      # fused bias + valid mask
            pl.BlockSpec(fc_w_pad.shape, lambda i: (0, 0)),       # padded FC weight
            pl.BlockSpec(fc_b_pad.shape, lambda i: (0, 0)),       # padded FC bias
        ],
        out_specs=pl.BlockSpec((b_tile, C_PAD), lambda i: (i, 0)),
        out_shape=jax.ShapeDtypeStruct((b_pad, C_PAD), jnp.float32),
        compiler_params=pltpu.CompilerParams(
            dimension_semantics=("parallel",)),
    )(ids_col, amask_col, embed_bf16, w_all, bias_mask, fc_w_pad, fc_b_pad)
    return logits_pad[:B, :NUM_CLASSES]


# ------------------------- parameter init / packing --------------------------
def init_params(key):
    keys = jax.random.split(key, 2 * len(FILTER_SIZES) + 3)
    conv_params = []
    for i, fs in enumerate(FILTER_SIZES):
        # kernel layout [fs, H, F]  (== Conv1d weight[f, h, k] transposed)
        w = jax.random.normal(keys[2 * i], (fs, HIDDEN_SIZE, NUM_FILTERS), jnp.float32) * 0.05
        b = jax.random.normal(keys[2 * i + 1], (1, NUM_FILTERS), jnp.float32) * 0.05
        conv_params.append((w, b))
    fc_w = jax.random.normal(keys[-3], (N_CONV, NUM_CLASSES), jnp.float32) * 0.05
    fc_b = jax.random.normal(keys[-2], (1, NUM_CLASSES), jnp.float32) * 0.05
    embed_table = jax.random.normal(keys[-1], (VOCAB, HIDDEN_SIZE), jnp.float32) * 0.1
    return conv_params, fc_w, fc_b, embed_table


def pack_params(conv_params, fc_w, fc_b, embed_table, seq_len):
    """Fuse/zero-pad all weights into MXU- and lane-friendly slabs (done once)."""
    w_all = jnp.zeros((K_CONV, N_PAD), jnp.float32)
    # bias_mask[t, c] = conv bias for valid window positions, -1e30 where the
    # window would overrun the sequence (ReLU then clamps those to 0).
    bias_mask = jnp.full((seq_len, N_PAD), NEG_MASK, jnp.float32)
    for i, (fs, (w, b)) in enumerate(zip(FILTER_SIZES, conv_params)):
        c0 = i * NUM_FILTERS
        w_all = w_all.at[:fs * HIDDEN_SIZE, c0:c0 + NUM_FILTERS].set(
            w.reshape(fs * HIDDEN_SIZE, NUM_FILTERS))
        valid = seq_len - fs + 1
        bias_mask = bias_mask.at[:valid, c0:c0 + NUM_FILTERS].set(
            jnp.broadcast_to(b[0], (valid, NUM_FILTERS)))
    fc_w_pad = jnp.zeros((N_PAD, C_PAD), jnp.float32).at[:N_CONV, :NUM_CLASSES].set(fc_w)
    fc_b_pad = jnp.zeros((1, C_PAD), jnp.float32).at[0, :NUM_CLASSES].set(fc_b[0])
    return (embed_table.astype(jnp.bfloat16),
            w_all.astype(jnp.bfloat16), bias_mask,
            fc_w_pad.astype(jnp.bfloat16), fc_b_pad)


# ---------------------------- pure-JAX reference ------------------------------
def reference_forward(input_ids, attention_mask, conv_params, fc_w, fc_b, embed_table):
    """Mirrors the kernel's bf16-operand / f32-accumulate numerics."""
    f32 = jnp.float32
    emb = embed_table.astype(jnp.bfloat16).astype(f32)
    h = emb[input_ids] * attention_mask[..., None].astype(f32)          # [B, S, H]
    h = h.astype(jnp.bfloat16)
    B, S, H = h.shape
    pooled = []
    for fs, (w, b) in zip(FILTER_SIZES, conv_params):
        L = S - fs + 1
        wk = w.reshape(fs * H, NUM_FILTERS).astype(jnp.bfloat16)
        windows = jnp.stack(
            [h[:, t:t + fs, :].reshape(B, fs * H) for t in range(L)], axis=1)
        conv = jnp.einsum("blk,kf->blf", windows, wk,
                          preferred_element_type=f32) + b                # [B, L, F]
        pooled.append(jnp.max(jax.nn.relu(conv), axis=1))                # [B, F]
    feat = jnp.concatenate(pooled, axis=1).astype(jnp.bfloat16)          # [B, 24]
    return jnp.dot(feat, fc_w.astype(jnp.bfloat16),
                   preferred_element_type=f32) + fc_b


# ----------------------------------- main ------------------------------------
if __name__ == "__main__":
    key = jax.random.PRNGKey(0)
    k_ids, k_params = jax.random.split(key)

    input_ids = jax.random.randint(k_ids, (BATCH, SEQ_LEN), 0, VOCAB, dtype=jnp.int32)
    attention_mask = jnp.ones((BATCH, SEQ_LEN), dtype=jnp.int32)

    conv_params, fc_w, fc_b, embed_table = init_params(k_params)
    packed = pack_params(conv_params, fc_w, fc_b, embed_table, SEQ_LEN)

    logits = bert_textcnn_forward(input_ids, attention_mask, packed)   # [B, 2]
    logits = jax.block_until_ready(logits)
    assert logits.shape == (BATCH, NUM_CLASSES)

    ref = reference_forward(input_ids, attention_mask, conv_params, fc_w, fc_b, embed_table)
    assert jnp.allclose(logits, ref, atol=2e-3, rtol=2e-2)

    print("KERNEL_OK")
</pallas_src>

<mosaic_0001>
module attributes {stable_mosaic.version = 11 : i64} {
  func.func @bert_textcnn_kernel(%arg0: i32, %arg1: memref<16x1xi32, #tpu.memory_space<vmem>>, %arg2: memref<16x1xf32, #tpu.memory_space<vmem>>, %arg3: memref<64x32xbf16, #tpu.memory_space<vmem>>, %arg4: memref<128x128xbf16, #tpu.memory_space<vmem>>, %arg5: memref<8x128xf32, #tpu.memory_space<vmem>>, %arg6: memref<128x128xbf16, #tpu.memory_space<vmem>>, %arg7: memref<1x128xf32, #tpu.memory_space<vmem>>, %arg8: memref<2x128xf32, #tpu.memory_space<vmem>>) attributes {dimension_semantics = [#tpu.dimension_semantics<parallel>], iteration_bounds = array<i64: 1>, scalar_prefetch = 0 : i64, scratch_operands = 0 : i64, tpu.core_type = #tpu.core_type<tc>, window_params = [{transform_indices = @transform_0, window_bounds = array<i64: 16, 1>}, {transform_indices = @transform_1, window_bounds = array<i64: 16, 1>}, {pipeline_mode = #tpu.pipeline_mode<synchronous>, transform_indices = @transform_2, window_bounds = array<i64: 64, 32>}, {pipeline_mode = #tpu.pipeline_mode<synchronous>, transform_indices = @transform_3, window_bounds = array<i64: 128, 128>}, {pipeline_mode = #tpu.pipeline_mode<synchronous>, transform_indices = @transform_4, window_bounds = array<i64: 8, 128>}, {pipeline_mode = #tpu.pipeline_mode<synchronous>, transform_indices = @transform_5, window_bounds = array<i64: 128, 128>}, {pipeline_mode = #tpu.pipeline_mode<synchronous>, transform_indices = @transform_6, window_bounds = array<i64: 1, 128>}, {transform_indices = @transform_7, window_bounds = array<i64: 2, 128>}]} {
    %c0 = arith.constant 0 : index
    %c0_0 = arith.constant 0 : index
    %0 = vector.load %arg1[%c0, %c0_0] : memref<16x1xi32, #tpu.memory_space<vmem>>, vector<16x1xi32>
    %1 = tpu.iota {dimensions = array<i32: 1>} : vector<16x64xi32>
    %2 = vector.broadcast %0 : vector<16x1xi32> to vector<16x64xi32>
    %3 = arith.cmpi eq, %1, %2 : vector<16x64xi32>
    %4 = arith.extui %3 : vector<16x64xi1> to vector<16x64xi32>
    %5 = arith.sitofp %4 : vector<16x64xi32> to vector<16x64xf32>
    %6 = arith.truncf %5 : vector<16x64xf32> to vector<16x64xbf16>
    %c0_1 = arith.constant 0 : index
    %c0_2 = arith.constant 0 : index
    %7 = vector.load %arg3[%c0_1, %c0_2] : memref<64x32xbf16, #tpu.memory_space<vmem>>, vector<64x32xbf16>
    %cst = arith.constant dense<0.000000e+00> : vector<16x32xf32>
    %8 = tpu.matmul %6, %7, %cst {dimension_numbers = #tpu.dot_dimension_numbers<[1], [0], [0], [1], [0, 0, 1, 1], [], []>} : vector<16x64xbf16>, vector<64x32xbf16>, vector<16x32xf32> -> vector<16x32xf32>
    %c0_3 = arith.constant 0 : index
    %c0_4 = arith.constant 0 : index
    %9 = vector.load %arg2[%c0_3, %c0_4] : memref<16x1xf32, #tpu.memory_space<vmem>>, vector<16x1xf32>
    %10 = vector.broadcast %9 : vector<16x1xf32> to vector<16x32xf32>
    %11 = arith.mulf %8, %10 : vector<16x32xf32>
    %cst_5 = arith.constant 0.000000e+00 : f32
    %12 = vector.broadcast %cst_5 : f32 to vector<8x32xf32>
    %13 = tpu.concatenate %11, %12 in 0 : vector<16x32xf32>, vector<8x32xf32> -> vector<24x32xf32>
    %14 = vector.extract_strided_slice %13 {offsets = [0, 0], sizes = [16, 32], strides = [1, 1]} : vector<24x32xf32> to vector<16x32xf32>
    %15 = arith.truncf %14 : vector<16x32xf32> to vector<16x32xbf16>
    %16 = vector.extract_strided_slice %13 {offsets = [1, 0], sizes = [16, 32], strides = [1, 1]} : vector<24x32xf32> to vector<16x32xf32>
    %17 = arith.truncf %16 : vector<16x32xf32> to vector<16x32xbf16>
    %18 = vector.extract_strided_slice %13 {offsets = [2, 0], sizes = [16, 32], strides = [1, 1]} : vector<24x32xf32> to vector<16x32xf32>
    %19 = arith.truncf %18 : vector<16x32xf32> to vector<16x32xbf16>
    %20 = vector.extract_strided_slice %13 {offsets = [3, 0], sizes = [16, 32], strides = [1, 1]} : vector<24x32xf32> to vector<16x32xf32>
    %21 = arith.truncf %20 : vector<16x32xf32> to vector<16x32xbf16>
    %22 = tpu.concatenate %15, %17, %19, %21 in 1 : vector<16x32xbf16>, vector<16x32xbf16>, vector<16x32xbf16>, vector<16x32xbf16> -> vector<16x128xbf16>
    %c0_6 = arith.constant 0 : index
    %c0_7 = arith.constant 0 : index
    %23 = vector.load %arg4[%c0_6, %c0_7] : memref<128x128xbf16, #tpu.memory_space<vmem>>, vector<128x128xbf16>
    %cst_8 = arith.constant dense<0.000000e+00> : vector<16x128xf32>
    %24 = tpu.matmul %22, %23, %cst_8 {dimension_numbers = #tpu.dot_dimension_numbers<[1], [0], [0], [1], [0, 0, 1, 1], [], []>} : vector<16x128xbf16>, vector<128x128xbf16>, vector<16x128xf32> -> vector<16x128xf32>
    %25 = vector.shape_cast %24 : vector<16x128xf32> to vector<2x8x128xf32>
    %c0_9 = arith.constant 0 : index
    %c0_10 = arith.constant 0 : index
    %26 = vector.load %arg5[%c0_9, %c0_10] : memref<8x128xf32, #tpu.memory_space<vmem>>, vector<8x128xf32>
    %27 = vector.shape_cast %26 : vector<8x128xf32> to vector<1x8x128xf32>
    %28 = vector.broadcast %27 : vector<1x8x128xf32> to vector<2x8x128xf32>
    %29 = arith.addf %25, %28 : vector<2x8x128xf32>
    %cst_11 = arith.constant 0.000000e+00 : f32
    %30 = vector.broadcast %cst_11 : f32 to vector<2x8x128xf32>
    %31 = arith.maximumf %29, %30 : vector<2x8x128xf32>
    %cst_12 = arith.constant dense<0xFF800000> : vector<2x128xf32>
    %32 = vector.multi_reduction <maximumf>, %31, %cst_12 [1] : vector<2x8x128xf32> to vector<2x128xf32>
    %33 = arith.truncf %32 : vector<2x128xf32> to vector<2x128xbf16>
    %c0_13 = arith.constant 0 : index
    %c0_14 = arith.constant 0 : index
    %34 = vector.load %arg6[%c0_13, %c0_14] : memref<128x128xbf16, #tpu.memory_space<vmem>>, vector<128x128xbf16>
    %cst_15 = arith.constant dense<0.000000e+00> : vector<2x128xf32>
    %35 = tpu.matmul %33, %34, %cst_15 {dimension_numbers = #tpu.dot_dimension_numbers<[1], [0], [0], [1], [0, 0, 1, 1], [], []>} : vector<2x128xbf16>, vector<128x128xbf16>, vector<2x128xf32> -> vector<2x128xf32>
    %c0_16 = arith.constant 0 : index
    %c0_17 = arith.constant 0 : index
    %36 = vector.load %arg7[%c0_16, %c0_17] : memref<1x128xf32, #tpu.memory_space<vmem>>, vector<1x128xf32>
    %37 = vector.broadcast %36 : vector<1x128xf32> to vector<2x128xf32>
    %38 = arith.addf %35, %37 : vector<2x128xf32>
    %c0_18 = arith.constant 0 : index
    %c0_19 = arith.constant 0 : index
    %39 = vector.load %arg8[%c0_18, %c0_19] : memref<2x128xf32, #tpu.memory_space<vmem>>, vector<2x128xf32>
    tpu.vector_store %arg8[%c0_18, %c0_19], %38 {strides = array<i32>} : memref<2x128xf32, #tpu.memory_space<vmem>>, vector<2x128xf32>,
    return
  }
  func.func @transform_0(%arg0: i32) -> (i32, i32) {
    %c0_i32 = arith.constant 0 : i32
    %c0_i32_0 = arith.constant 0 : i32
    return %arg0, %c0_i32 : i32, i32
  }
  func.func @transform_1(%arg0: i32) -> (i32, i32) {
    %c0_i32 = arith.constant 0 : i32
    %c0_i32_0 = arith.constant 0 : i32
    return %arg0, %c0_i32 : i32, i32
  }
  func.func @transform_2(%arg0: i32) -> (i32, i32) {
    %c0_i32 = arith.constant 0 : i32
    %c0_i32_0 = arith.constant 0 : i32
    %c0_i32_1 = arith.constant 0 : i32
    return %c0_i32, %c0_i32_0 : i32, i32
  }
  func.func @transform_3(%arg0: i32) -> (i32, i32) {
    %c0_i32 = arith.constant 0 : i32
    %c0_i32_0 = arith.constant 0 : i32
    %c0_i32_1 = arith.constant 0 : i32
    return %c0_i32, %c0_i32_0 : i32, i32
  }
  func.func @transform_4(%arg0: i32) -> (i32, i32) {
    %c0_i32 = arith.constant 0 : i32
    %c0_i32_0 = arith.constant 0 : i32
    %c0_i32_1 = arith.constant 0 : i32
    return %c0_i32, %c0_i32_0 : i32, i32
  }
  func.func @transform_5(%arg0: i32) -> (i32, i32) {
    %c0_i32 = arith.constant 0 : i32
    %c0_i32_0 = arith.constant 0 : i32
    %c0_i32_1 = arith.constant 0 : i32
    return %c0_i32, %c0_i32_0 : i32, i32
  }
  func.func @transform_6(%arg0: i32) -> (i32, i32) {
    %c0_i32 = arith.constant 0 : i32
    %c0_i32_0 = arith.constant 0 : i32
    %c0_i32_1 = arith.constant 0 : i32
    return %c0_i32, %c0_i32_0 : i32, i32
  }
  func.func @transform_7(%arg0: i32) -> (i32, i32) {
    %c0_i32 = arith.constant 0 : i32
    %c0_i32_0 = arith.constant 0 : i32
    return %arg0, %c0_i32 : i32, i32
  }
}

</mosaic_0001>

<llo_original>
// kernel: tpu_custom_call.1
$region0: #{tpu_custom_call.1}
  #allocation0 [shape = 'u32[]', space=smem, size = 0x4, offset = 0x4, fixed_abs, tag = 'smem constant byte address 0x4 - core index']
  #allocation1 [shape = 'u32[144,128]{1,0:T(1,128)}', space=vmem, size = 0x12000, scoped, tag = 'internal scratch']
  %s0 = inlined_call_operand.vmem [shape: s32[16,1], index: 0, kind: input, shape index: {}]
  %s1 = inlined_call_operand.vmem [shape: f32[16,1], index: 1, kind: input, shape index: {}]
  %s2 = inlined_call_operand.vmem [shape: bf16[64,32], index: 2, kind: input, shape index: {}]
  %s3 = inlined_call_operand.vmem [shape: bf16[128,128], index: 3, kind: input, shape index: {}]
  %s4 = inlined_call_operand.vmem [shape: f32[8,128], index: 4, kind: input, shape index: {}]
  %s5 = inlined_call_operand.hbm [shape: bf16[128,128], index: 5, kind: input, shape index: {}]
  %s6 = inlined_call_operand.vmem [shape: f32[1,128], index: 6, kind: input, shape index: {}]
  %s7 = inlined_call_operand.hbm [shape: f32[2,128], index: 7, kind: output, shape index: {}]
  %s8 = sld [smem:[#allocation0]]
  $region42: #{tpu_custom_call.1} parent=0
    _
  %s10 = ssub.s32 1, %s8
  %s11 = scalar_select 0, %s10, %s8
  $region1: #{tpu_custom_call.1} parent=0
    #allocation2 [shape = 'u8[32768]{0}', space=vmem, size = 0x8000, scoped, tag = 'input window, operand 5, single buffered']
    #allocation3 [shape = 's32[1]{0}', space=sflag, size = 0x4, scoped, tag = 'scoped memory for tpu_custom_call.1']
    #allocation4 [shape = 's32[1]{0}', space=sflag, size = 0x4, scoped, tag = 'scoped memory for tpu_custom_call.1']
    #allocation5 [shape = 'u8[1024]{0}', space=vmem, size = 0x400, scoped, tag = 'output window, operand 0, single buffered']
    %12 = vsyncpa [#allocation3], 0
    %13 = vsyncpa [#allocation4], 0
    // Predicated region
    $region2: #{tpu_custom_call.1} parent=1 // pred_check
      _
    $region3: #{tpu_custom_call.1} parent=1 // pred_check_branch
      %15 = sbr.rel (0) target = $region5
    $region4: #{tpu_custom_call.1} parent=1 // pred_region
      _
    $region5: #{tpu_custom_call.1} parent=1 // pred_fallthru
      _
    // Predicated region
    $region6: #{tpu_custom_call.1} parent=1 // pred_check
      _
    $region7: #{tpu_custom_call.1} parent=1 // pred_check_branch
      %17 = sbr.rel (0) target = $region9
    $region8: #{tpu_custom_call.1} parent=1 // pred_region
      _
    $region9: #{tpu_custom_call.1} parent=1 // pred_fallthru
      _
    // Predicated region
    $region10: #{tpu_custom_call.1} parent=1 // pred_check
      _
    $region11: #{tpu_custom_call.1} parent=1 // pred_check_branch
      %19 = sbr.rel (0) target = $region13
    $region12: #{tpu_custom_call.1} parent=1 // pred_region
      _
    $region13: #{tpu_custom_call.1} parent=1 // pred_fallthru
      _
    // Predicated region
    $region14: #{tpu_custom_call.1} parent=1 // pred_check
      _
    $region15: #{tpu_custom_call.1} parent=1 // pred_check_branch
      %21 = sbr.rel (0) target = $region17
    $region16: #{tpu_custom_call.1} parent=1 // pred_region
      _
    $region17: #{tpu_custom_call.1} parent=1 // pred_fallthru
      _
    // Predicated region
    $region18: #{tpu_custom_call.1} parent=1 // pred_check
      _
    $region19: #{tpu_custom_call.1} parent=1 // pred_check_branch
      %23 = sbr.rel (0) target = $region21
    $region20: #{tpu_custom_call.1} parent=1 // pred_region
      _
    $region21: #{tpu_custom_call.1} parent=1 // pred_fallthru
      _
    // Predicated region
    $region22: #{tpu_custom_call.1} parent=1 // pred_check
      _
    $region23: #{tpu_custom_call.1} parent=1 // pred_check_branch
      %25 = sbr.rel (0) target = $region25
    $region24: #{tpu_custom_call.1} parent=1 // pred_region
      %s27 = ssub.s32 1024, 1024
      %28 = vsyncadd [#allocation3], %s27
      %s29 = sshll.u32 [#allocation2], 4
      %s30 = int_to_ptr.vmem [resolvable:$true] %s29
      %35 = dma.hbm_to_vmem [thread:$0]  %s5, 1024, %s30, [#allocation3], 64, 64, 4
    $region25: #{tpu_custom_call.1} parent=1 // pred_fallthru
      _
    // Predicated region
    $region26: #{tpu_custom_call.1} parent=1 // pred_check
      _
    $region27: #{tpu_custom_call.1} parent=1 // pred_check_branch
      %37 = sbr.rel (0) target = $region29
    $region28: #{tpu_custom_call.1} parent=1 // pred_region
      _
    $region29: #{tpu_custom_call.1} parent=1 // pred_fallthru
      _
    // Predicated region
    $region30: #{tpu_custom_call.1} parent=1 // pred_check
      _
    $region31: #{tpu_custom_call.1} parent=1 // pred_check_branch
      %39 = sbr.rel (0) target = $region33
    $region32: #{tpu_custom_call.1} parent=1 // pred_region
      %40 = dma.done [#allocation3], 1024
    $region33: #{tpu_custom_call.1} parent=1 // pred_fallthru
      _
    %v42 = vld [vmem:[%s0] sm:$0xff]
    %v43 = vld [vmem:[%s0 + $0x8] sm:$0xff]
    %v44 = vlaneseq
    %v45 = vand.u32 %v44, 127
    %46 = vset.pattern.permute.xlu0 0
    %47 = vperm.xlu0 %46, %v42
    %v48 = vpop.permute.xlu0 %47
    %49 = vset.pattern.permute.xlu0 0
    %50 = vperm.xlu0 %49, %v43
    %v51 = vpop.permute.xlu0 %50
    %vm52 = vcmp.eq.s32.totalorder %v45, %v48
    %vm53 = vcmp.eq.s32.totalorder %v45, %v51
    %v54 = vsel %vm52, 1, 0
    %v55 = vsel %vm53, 1, 0
    %v56 = vcvt.s32.f32 %v54
    %v57 = vcvt.s32.f32 %v55
    %v58 = vpack.c.bf16 %v57, %v56
    %v59 = vld [vmem:[%s2] sm:$0xf]
    %v60 = vld [vmem:[%s2 + $0x4] sm:$0xf]
    %v61 = vld [vmem:[%s2 + $0x8] sm:$0xf]
    %v62 = vld [vmem:[%s2 + $0xc] sm:$0xf]
    %v63 = vld [vmem:[%s2 + $0x10] sm:$0xf]
    %v64 = vld [vmem:[%s2 + $0x14] sm:$0xf]
    %v65 = vld [vmem:[%s2 + $0x18] sm:$0xf]
    %v66 = vld [vmem:[%s2 + $0x1c] sm:$0xf]
    %v75 = vunpack.c.l.b16 %v59
    %v76 = vunpack.c.l.b16 %v60
    %v77 = vunpack.c.l.b16 %v61
    %v78 = vunpack.c.l.b16 %v62
    %v79 = vunpack.c.l.b16 %v63
    %v80 = vunpack.c.l.b16 %v64
    %v81 = vunpack.c.l.b16 %v65
    %v82 = vunpack.c.l.b16 %v66
    %v83 = vpack.c.b16 %v76, %v75
    %v84 = vpack.c.b16 %v78, %v77
    %v85 = vpack.c.b16 %v80, %v79
    %v86 = vpack.c.b16 %v82, %v81
    %vm91 = vcmask 523264
    %v93 = vsel %vm91, %v58, 0
    %95 = vmatprep.subr.bf16.mxu0 0
    %96 = vmatpush1.bf16.msra.mxu0 0
    %97 = vmatprep.subr.bf16.mxu0 0
    %98 = vmatpush1.bf16.msra.mxu0 0
    %99 = vmatprep.subr.bf16.mxu0 0
    %100 = vmatpush1.bf16.msra.mxu0 0
    %101 = vmatprep.subr.bf16.mxu0 0
    %102 = vmatpush1.bf16.msra.mxu0 0
    %103 = vmatprep.subr.bf16.mxu0 0
    %104 = vmatpush1.bf16.msra.mxu0 %v86
    %105 = vmatprep.subr.bf16.mxu0 0
    %106 = vmatpush1.bf16.msra.mxu0 %v85
    %107 = vmatprep.subr.bf16.mxu0 0
    %108 = vmatpush1.bf16.msra.mxu0 %v84
    %109 = vmatprep.subr.bf16.mxu0 0
    %110 = vmatpush1.bf16.msra.mxu0 %v83
    %111 = vmatprep.subr.bf16.mxu0 0
    %112 = vmatpush2.bf16.msra.mxu0 0
    %113 = vmatprep.subr.bf16.mxu0 0
    %114 = vmatpush2.bf16.msra.mxu0 0
    %115 = vmatprep.subr.bf16.mxu0 0
    %116 = vmatpush2.bf16.msra.mxu0 0
    %117 = vmatprep.subr.bf16.mxu0 0
    %118 = vmatpush2.bf16.msra.mxu0 0
    %119 = vmatprep.subr.bf16.mxu0 0
    %120 = vmatpush2.bf16.msra.mxu0 0
    %121 = vmatprep.subr.bf16.mxu0 0
    %122 = vmatpush2.bf16.msra.mxu0 0
    %123 = vmatprep.subr.bf16.mxu0 0
    %124 = vmatpush2.bf16.msra.mxu0 0
    %125 = vmatprep.subr.bf16.mxu0 0
    %126 = vmatpush2.bf16.msra.mxu0 0
    %127 = vmatprep.mubr.bf16.mxu0 0
    %128 = vmatmul.mubr.bf16.gmra.mxu0 %v93
    %v129 = vpop.f32.mrf.mxu0
    %v130 = vadd.f32 0.0, %v129
    %v131 = vpop.f32.mrf.mxu0
    %v132 = vpop.f32.mrf.mxu0
    %v133 = vadd.f32 0.0, %v132
    %v134 = vpop.f32.mrf.mxu0
    %135 = vdwg.mxu0
    %v136 = vld [vmem:[%s1] sm:$0xff]
    %v137 = vld [vmem:[%s1 + $0x8] sm:$0xff]
    %139 = vset.pattern.permute.xlu0 0
    %140 = vperm.xlu0 %139, %v136
    %v141 = vpop.permute.xlu0 %140
    %144 = vset.pattern.permute.xlu0 0
    %145 = vperm.xlu0 %144, %v137
    %v146 = vpop.permute.xlu0 %145
    %v148 = vmul.f32 %v130, %v141
    %v149 = vmul.f32 %v133, %v146
    %v150 = vpack.c.bf16 %v149, %v148
    %v151 = vpack.c.bf16 0.0, 0.0
    %vm152 = vsmask.f32 7424
    %v154 = vshrl.u32 %v150, 16
    %v156 = vshll.u32 %v150, 16
    %v158 = vrot.slane %v156, 1
    %v159 = vor.u32 %v154, %v158
    %v161 = vshll.u32 %v151, 16
    %v163 = vrot.slane %v161, 1
    %v164 = vsel %vm152, %v159, %v163
    %165 = vrot.lane.b32.xlu0 %v164, 32
    %v166 = vpop.permute.xlu0 %165
    %vm169 = vcmask 1046528
    %v170 = vrot.slane %v150, 1
    %v171 = vrot.slane %v151, 1
    %v172 = vsel %vm169, %v170, %v171
    %173 = vrot.lane.b32.xlu0 %v172, 64
    %v174 = vpop.permute.xlu0 %173
    %vm175 = vsmask.f32 6400
    %v176 = vrot.slane %v154, 1
    %v177 = vrot.slane %v156, 2
    %v178 = vor.u32 %v176, %v177
    %v179 = vshrl.u32 %v151, 16
    %v181 = vrot.slane %v179, 1
    %v182 = vrot.slane %v161, 2
    %v183 = vor.u32 %v181, %v182
    %v184 = vsel %vm175, %v178, %v183
    %185 = vrot.lane.b32.xlu0 %v184, 96
    %v186 = vpop.permute.xlu0 %185
    %vm187 = vcmask 261120
    %v189 = vsel %vm187, %v150, %v166
    %v191 = vsel %vm91, %v189, %v174
    %vm192 = vcmask 785408
    %v194 = vsel %vm192, %v191, %v186
    %v196 = vld [vmem:[%s3] sm:$0xf]
    %v197 = vld [vmem:[%s3 + $0x4] sm:$0xf]
    %v198 = vld [vmem:[%s3 + $0x8] sm:$0xf]
    %v199 = vld [vmem:[%s3 + $0xc] sm:$0xf]
    %v200 = vld [vmem:[%s3 + $0x10] sm:$0xf]
    %v201 = vld [vmem:[%s3 + $0x14] sm:$0xf]
    %v202 = vld [vmem:[%s3 + $0x18] sm:$0xf]
    %v203 = vld [vmem:[%s3 + $0x1c] sm:$0xf]
    %v204 = vld [vmem:[%s3 + $0x20] sm:$0xf]
    %v205 = vld [vmem:[%s3 + $0x24] sm:$0xf]
    %v206 = vld [vmem:[%s3 + $0x28] sm:$0xf]
    %v207 = vld [vmem:[%s3 + $0x2c] sm:$0xf]
    %v208 = vld [vmem:[%s3 + $0x30] sm:$0xf]
    %v209 = vld [vmem:[%s3 + $0x34] sm:$0xf]
    %v210 = vld [vmem:[%s3 + $0x38] sm:$0xf]
    %v211 = vld [vmem:[%s3 + $0x3c] sm:$0xf]
    %v228 = vunpack.c.l.b16 %v196
    %v229 = vunpack.c.l.b16 %v197
    %v230 = vunpack.c.l.b16 %v198
    %v231 = vunpack.c.l.b16 %v199
    %v232 = vunpack.c.l.b16 %v200
    %v233 = vunpack.c.l.b16 %v201
    %v234 = vunpack.c.l.b16 %v202
    %v235 = vunpack.c.l.b16 %v203
    %v236 = vunpack.c.l.b16 %v204
    %v237 = vunpack.c.l.b16 %v205
    %v238 = vunpack.c.l.b16 %v206
    %v239 = vunpack.c.l.b16 %v207
    %v240 = vunpack.c.l.b16 %v208
    %v241 = vunpack.c.l.b16 %v209
    %v242 = vunpack.c.l.b16 %v210
    %v243 = vunpack.c.l.b16 %v211
    %v244 = vpack.c.b16 %v229, %v228
    %v245 = vpack.c.b16 %v231, %v230
    %v246 = vpack.c.b16 %v233, %v232
    %v247 = vpack.c.b16 %v235, %v234
    %v248 = vpack.c.b16 %v237, %v236
    %v249 = vpack.c.b16 %v239, %v238
    %v250 = vpack.c.b16 %v241, %v240
    %v251 = vpack.c.b16 %v243, %v242
    %260 = vmatprep.subr.bf16.mxu0 0
    %261 = vmatpush1.bf16.msra.mxu0 %v251
    %262 = vmatprep.subr.bf16.mxu0 0
    %263 = vmatpush1.bf16.msra.mxu0 %v250
    %264 = vmatprep.subr.bf16.mxu0 0
    %265 = vmatpush1.bf16.msra.mxu0 %v249
    %266 = vmatprep.subr.bf16.mxu0 0
    %267 = vmatpush1.bf16.msra.mxu0 %v248
    %268 = vmatprep.subr.bf16.mxu0 0
    %269 = vmatpush1.bf16.msra.mxu0 %v247
    %270 = vmatprep.subr.bf16.mxu0 0
    %271 = vmatpush1.bf16.msra.mxu0 %v246
    %272 = vmatprep.subr.bf16.mxu0 0
    %273 = vmatpush1.bf16.msra.mxu0 %v245
    %274 = vmatprep.subr.bf16.mxu0 0
    %275 = vmatpush1.bf16.msra.mxu0 %v244
    %276 = vmatprep.subr.bf16.mxu0 0
    %277 = vmatpush2.bf16.msra.mxu0 0
    %278 = vmatprep.subr.bf16.mxu0 0
    %279 = vmatpush2.bf16.msra.mxu0 0
    %280 = vmatprep.subr.bf16.mxu0 0
    %281 = vmatpush2.bf16.msra.mxu0 0
    %282 = vmatprep.subr.bf16.mxu0 0
    %283 = vmatpush2.bf16.msra.mxu0 0
    %284 = vmatprep.subr.bf16.mxu0 0
    %285 = vmatpush2.bf16.msra.mxu0 0
    %286 = vmatprep.subr.bf16.mxu0 0
    %287 = vmatpush2.bf16.msra.mxu0 0
    %288 = vmatprep.subr.bf16.mxu0 0
    %289 = vmatpush2.bf16.msra.mxu0 0
    %290 = vmatprep.subr.bf16.mxu0 0
    %291 = vmatpush2.bf16.msra.mxu0 0
    %292 = vmatprep.mubr.bf16.mxu0 0
    %293 = vmatmul.mubr.bf16.gmra.mxu0 %v194
    %v294 = vpop.f32.mrf.mxu0
    %v295 = vadd.f32 0.0, %v294
    %v296 = vpop.f32.mrf.mxu0
    %v297 = vpop.f32.mrf.mxu0
    %v298 = vadd.f32 0.0, %v297
    %v299 = vpop.f32.mrf.mxu0
    %300 = vdwg.mxu0
    %v301 = vld [vmem:[%s4] sm:$0xff]
    %v302 = vadd.f32 %v295, %v301
    %v303 = vadd.f32 %v298, %v301
    %v304 = vmax.f32 %v302, 0.0
    %v305 = vmax.f32 %v303, 0.0
    %v306 = vrot.slane %v304, 4
    %v307 = vmax.f32 %v304, %v306
    %v308 = vrot.slane %v307, 2
    %v309 = vmax.f32 %v307, %v308
    %v310 = vrot.slane %v309, 1
    %v311 = vmax.f32 %v309, %v310
    %v312 = vrot.slane %v305, 4
    %v313 = vmax.f32 %v305, %v312
    %v314 = vrot.slane %v313, 2
    %v315 = vmax.f32 %v313, %v314
    %v316 = vrot.slane %v315, 1
    %v317 = vmax.f32 %v315, %v316
    %v318 = vpack.c.bf16 %v311, %v311
    %v319 = vpack.c.bf16 %v317, %v317
    %v320 = vld [vmem:[#allocation2] sm:$0xf]
    %v321 = vld [vmem:[#allocation2 + $0x4] sm:$0xf]
    %v322 = vld [vmem:[#allocation2 + $0x8] sm:$0xf]
    %v323 = vld [vmem:[#allocation2 + $0xc] sm:$0xf]
    %v324 = vld [vmem:[#allocation2 + $0x10] sm:$0xf]
    %v325 = vld [vmem:[#allocation2 + $0x14] sm:$0xf]
    %v326 = vld [vmem:[#allocation2 + $0x18] sm:$0xf]
    %v327 = vld [vmem:[#allocation2 + $0x1c] sm:$0xf]
    %v328 = vld [vmem:[#allocation2 + $0x20] sm:$0xf]
    %v329 = vld [vmem:[#allocation2 + $0x24] sm:$0xf]
    %v330 = vld [vmem:[#allocation2 + $0x28] sm:$0xf]
    %v331 = vld [vmem:[#allocation2 + $0x2c] sm:$0xf]
    %v332 = vld [vmem:[#allocation2 + $0x30] sm:$0xf]
    %v333 = vld [vmem:[#allocation2 + $0x34] sm:$0xf]
    %v334 = vld [vmem:[#allocation2 + $0x38] sm:$0xf]
    %v335 = vld [vmem:[#allocation2 + $0x3c] sm:$0xf]
    %v336 = vld [vmem:[%s6] sm:$0x1]
    %v338 = vlaneseq
    %v339 = vshrl.u32 %v338, 7
    %v340 = vsub.s32 0, %v339
    %v341 = vrot.slane %v336, %v340
    %v345 = vunpack.c.l.b16 %v318
    %v346 = vunpack.c.l.b16 %v319
    %vm347 = vcmask 1041409
    %v348 = vsel %vm347, %v346, %v345
    %v349 = vpack.c.b16 %v348, %v348
    %v367 = vunpack.c.l.b16 %v320
    %v368 = vunpack.c.l.b16 %v321
    %v369 = vunpack.c.l.b16 %v322
    %v370 = vunpack.c.l.b16 %v323
    %v371 = vunpack.c.l.b16 %v324
    %v372 = vunpack.c.l.b16 %v325
    %v373 = vunpack.c.l.b16 %v326
    %v374 = vunpack.c.l.b16 %v327
    %v375 = vunpack.c.l.b16 %v328
    %v376 = vunpack.c.l.b16 %v329
    %v377 = vunpack.c.l.b16 %v330
    %v378 = vunpack.c.l.b16 %v331
    %v379 = vunpack.c.l.b16 %v332
    %v380 = vunpack.c.l.b16 %v333
    %v381 = vunpack.c.l.b16 %v334
    %v382 = vunpack.c.l.b16 %v335
    %v383 = vpack.c.b16 %v368, %v367
    %v384 = vpack.c.b16 %v370, %v369
    %v385 = vpack.c.b16 %v372, %v371
    %v386 = vpack.c.b16 %v374, %v373
    %v387 = vpack.c.b16 %v376, %v375
    %v388 = vpack.c.b16 %v378, %v377
    %v389 = vpack.c.b16 %v380, %v379
    %v390 = vpack.c.b16 %v382, %v381
    %399 = vmatprep.subr.bf16.mxu0 0
    %400 = vmatpush1.bf16.msra.mxu0 %v390
    %401 = vmatprep.subr.bf16.mxu0 0
    %402 = vmatpush1.bf16.msra.mxu0 %v389
    %403 = vmatprep.subr.bf16.mxu0 0
    %404 = vmatpush1.bf16.msra.mxu0 %v388
    %405 = vmatprep.subr.bf16.mxu0 0
    %406 = vmatpush1.bf16.msra.mxu0 %v387
    %407 = vmatprep.subr.bf16.mxu0 0
    %408 = vmatpush1.bf16.msra.mxu0 %v386
    %409 = vmatprep.subr.bf16.mxu0 0
    %410 = vmatpush1.bf16.msra.mxu0 %v385
    %411 = vmatprep.subr.bf16.mxu0 0
    %412 = vmatpush1.bf16.msra.mxu0 %v384
    %413 = vmatprep.subr.bf16.mxu0 0
    %414 = vmatpush1.bf16.msra.mxu0 %v383
    %415 = vmatprep.subr.bf16.mxu0 0
    %416 = vmatpush2.bf16.msra.mxu0 0
    %417 = vmatprep.subr.bf16.mxu0 0
    %418 = vmatpush2.bf16.msra.mxu0 0
    %419 = vmatprep.subr.bf16.mxu0 0
    %420 = vmatpush2.bf16.msra.mxu0 0
    %421 = vmatprep.subr.bf16.mxu0 0
    %422 = vmatpush2.bf16.msra.mxu0 0
    %423 = vmatprep.subr.bf16.mxu0 0
    %424 = vmatpush2.bf16.msra.mxu0 0
    %425 = vmatprep.subr.bf16.mxu0 0
    %426 = vmatpush2.bf16.msra.mxu0 0
    %427 = vmatprep.subr.bf16.mxu0 0
    %428 = vmatpush2.bf16.msra.mxu0 0
    %429 = vmatprep.subr.bf16.mxu0 0
    %430 = vmatpush2.bf16.msra.mxu0 0
    %431 = vmatprep.mubr.bf16.mxu0 0
    %432 = vmatmul.mubr.bf16.gmra.mxu0 %v349
    %v433 = vpop.f32.mrf.mxu0
    %v434 = vadd.f32 %v341, %v433
    %v435 = vpop.f32.mrf.mxu0
    %v436 = vpop.f32.mrf.mxu0
    %v437 = vpop.f32.mrf.mxu0
    %438 = vdwg.mxu0
    %439 = vst [vmem:[#allocation5] sm:$0x3] %v434
    // Predicated region
    $region34: #{tpu_custom_call.1} parent=1 // pred_check
      _
    $region35: #{tpu_custom_call.1} parent=1 // pred_check_branch
      %441 = sbr.rel (0) target = $region37
    $region36: #{tpu_custom_call.1} parent=1 // pred_region
      %s443 = ssub.s32 32, 32
      %444 = vsyncadd [#allocation4], %s443
      %s446 = sshll.u32 [#allocation5], 4
      %s447 = int_to_ptr.vmem [resolvable:$true] %s446
      %449 = dma.vmem_to_hbm [thread:$0]  %s447, 32, %s7, [#allocation4]
    $region37: #{tpu_custom_call.1} parent=1 // pred_fallthru
      _
    // Predicated region
    $region38: #{tpu_custom_call.1} parent=1 // pred_check
      _
    $region39: #{tpu_custom_call.1} parent=1 // pred_check_branch
      %451 = sbr.rel (0) target = $region41
    $region40: #{tpu_custom_call.1} parent=1 // pred_region
      %452 = dma.done [#allocation4], 32
    $region41: #{tpu_custom_call.1} parent=1 // pred_fallthru
      _
    %453 = vsyncpa [#allocation3], 1
    %454 = vsyncpa [#allocation4], 1

</llo_original>
